<compile_context>
chip_gen: v5e
topology: v5e:2x2
jax: 0.10.0
libtpu: 0.0.40
codegen_flags: <defaults>
</compile_context>

<pallas_src>
import jax
import jax.numpy as jnp
from jax.experimental import pallas as pl
from jax.experimental.pallas import tpu as pltpu


def single_conv_kernel(x_ref, w_ref, b_ref, o_ref):
    # x_ref : (N, H, W*Cin)   channels-last input slab (unpadded, f32)
    # w_ref : (Kp, W*Cout)    kh-concatenated banded weights (bf16),
    #                         Kp = 3*W*Cin rounded up to a multiple of 128
    # b_ref : (1, W*Cout)     bias tiled across width (f32, lane-dense)
    # o_ref : (N, H, W*Cout)  output slab (lane-dense last dim)
    n, h, wcin = x_ref.shape
    kp, wcout = w_ref.shape

    x = x_ref[...]                                              # (N, H, W*Cin)

    # Height halo built in vregs (no scratch, no VMEM->VMEM copy):
    zrow = jnp.zeros((n, 1, wcin), dtype=x.dtype)
    x_up = jnp.concatenate([zrow, x[:, : h - 1, :]], axis=1)    # row h-1 (kh=0)
    x_dn = jnp.concatenate([x[:, 1:, :], zrow], axis=1)         # row h+1 (kh=2)

    # im2row over kh, concatenated along K (lanes); zero-pad K to Kp so the
    # LHS is lane-dense and matches the zero-padded weight rows.
    parts = [x_up, x, x_dn]
    if kp > 3 * wcin:
        parts.append(jnp.zeros((n, h, kp - 3 * wcin), dtype=x.dtype))
    lhs = jnp.concatenate(parts, axis=-1).reshape(n * h, kp)    # (N*H, Kp)

    # Single fused GEMM for the whole batch: bf16 operands, f32 accumulation.
    acc = jnp.dot(lhs.astype(w_ref.dtype), w_ref[...],
                  preferred_element_type=jnp.float32)           # (N*H, W*Cout)

    # Bias + ReLU in f32 (bn1 is nn.Identity), lane-dense unmasked store.
    out = jnp.maximum(acc + b_ref[...], 0.0)
    o_ref[...] = out.reshape(n, h, wcout).astype(o_ref.dtype)


def _build_banded_weight(weight_oihw, W, k_pad, dtype):
    """Fold the (kw, Cin) reduction of a 3x3 conv into one kh-concatenated
    block-banded matrix of shape (k_pad, W*Cout) with
        B[kh*W*Cin + w_in*Cin + ci, w_out*Cout + co] = weight[co, ci, kh, kw],
    where w_in = w_out + kw - 1; out-of-range taps stay zero (== the conv's
    width zero-padding); rows beyond 3*W*Cin are zero K-padding.
    """
    Cout, Cin, KH, KW = weight_oihw.shape
    w_hwio = jnp.transpose(weight_oihw, (2, 3, 1, 0))            # (3, 3, Cin, Cout)
    sel = jnp.stack([jnp.eye(W, k=1 - kw, dtype=weight_oihw.dtype)
                     for kw in range(KW)])                       # (3, W_in, W_out)
    band = jnp.einsum("wio,hwcd->hicod", sel, w_hwio)            # (3, W, Cin, W, Cout)
    w_cat = band.reshape(KH * W * Cin, W * Cout)                 # kh bands stacked on K
    if k_pad > KH * W * Cin:
        w_cat = jnp.concatenate(
            [w_cat, jnp.zeros((k_pad - KH * W * Cin, W * Cout), w_cat.dtype)],
            axis=0)
    return w_cat.astype(dtype)


def single_conv(x_nchw, weight_oihw, bias):
    """SingleConv forward: Conv2d(3x3, pad=1, stride=1, bias) + Identity + ReLU."""
    N, Cin, H, W = x_nchw.shape
    Cout = weight_oihw.shape[0]
    WCin, WCout = W * Cin, W * Cout
    Kp = ((3 * WCin + 127) // 128) * 128     # lane-dense K (256 here)

    # NCHW interface glue (would vanish in an NHWC end-to-end pipeline).
    x_slab = jnp.transpose(x_nchw, (0, 2, 3, 1)).reshape(N, H, WCin)

    # Static weight/bias transform (tiny; done once, outside the hot path).
    w_cat = _build_banded_weight(weight_oihw, W, Kp, jnp.bfloat16)   # (Kp, W*Cout)
    b_row = jnp.tile(bias, W).reshape(1, WCout).astype(jnp.float32)  # (1, W*Cout)

    flops = 2 * N * H * Kp * WCout
    bytes_accessed = (N * H * WCin * x_nchw.dtype.itemsize
                      + Kp * WCout * 2 + WCout * 4
                      + N * H * WCout * x_nchw.dtype.itemsize)

    out_slab = pl.pallas_call(
        single_conv_kernel,
        out_shape=jax.ShapeDtypeStruct((N, H, WCout), x_nchw.dtype),
        grid_spec=pltpu.PrefetchScalarGridSpec(
            num_scalar_prefetch=0,
            grid=(1,),                       # tiny problem: one step, one GEMM
            in_specs=[
                pl.BlockSpec((N, H, WCin), lambda i: (0, 0, 0)),
                pl.BlockSpec((Kp, WCout), lambda i: (0, 0)),
                pl.BlockSpec((1, WCout), lambda i: (0, 0)),
            ],
            out_specs=pl.BlockSpec((N, H, WCout), lambda i: (0, 0, 0)),
        ),
        compiler_params=pltpu.CompilerParams(
            dimension_semantics=("arbitrary",),
        ),
        cost_estimate=pl.CostEstimate(flops=flops, transcendentals=0,
                                      bytes_accessed=bytes_accessed),
    )(x_slab, w_cat, b_row)

    # (N, H, W*Cout) -> (N, H, W, Cout) is a free lane split; the transpose
    # back to NCHW is module-interface glue.
    return jnp.transpose(out_slab.reshape(N, H, W, Cout), (0, 3, 1, 2))


def reference_single_conv(x_nchw, weight_oihw, bias):
    """Pure-JAX reference matching PyTorch Conv2d(k=3, pad=1) + ReLU."""
    out = jax.lax.conv_general_dilated(
        x_nchw, weight_oihw,
        window_strides=(1, 1),
        padding=((1, 1), (1, 1)),
        dimension_numbers=("NCHW", "OIHW", "NCHW"),
        precision=jax.lax.Precision.HIGHEST,
    )
    out = out + bias.reshape(1, -1, 1, 1)
    return jnp.maximum(out, 0.0)


if __name__ == "__main__":
    # SingleConv(inplanes=4, planes=8), input (N=2, C=4, H=16, W=16)
    N, Cin, Cout, H, W = 2, 4, 8, 16, 16

    key = jax.random.PRNGKey(0)
    kx, kw, kb = jax.random.split(key, 3)
    x = jax.random.normal(kx, (N, Cin, H, W), dtype=jnp.float32)
    weight = 0.1 * jax.random.normal(kw, (Cout, Cin, 3, 3), dtype=jnp.float32)
    bias = 0.1 * jax.random.normal(kb, (Cout,), dtype=jnp.float32)

    out = single_conv(x, weight, bias)
    out = jax.block_until_ready(out)
    assert out.shape == (N, Cout, H, W)

    # Matched-quantization reference: the kernel multiplies bf16-rounded
    # operands with f32 accumulation, so an f32 conv over bf16-rounded
    # inputs/weights must match to ~f32 roundoff.
    x_q = x.astype(jnp.bfloat16).astype(jnp.float32)
    w_q = weight.astype(jnp.bfloat16).astype(jnp.float32)
    ref_q = reference_single_conv(x_q, w_q, bias)
    assert jnp.allclose(out, ref_q, atol=1e-4, rtol=1e-4)

    # Loose sanity check against the pure-f32 module semantics.
    ref = reference_single_conv(x, weight, bias)
    assert jnp.allclose(out, ref, atol=2e-2, rtol=2e-2)

    print("KERNEL_OK")
</pallas_src>

<mosaic_0001>
module attributes {stable_mosaic.version = 11 : i64} {
  func.func @single_conv_kernel(%arg0: i32, %arg1: memref<2x16x64xf32, #tpu.memory_space<vmem>>, %arg2: memref<256x128xbf16, #tpu.memory_space<vmem>>, %arg3: memref<1x128xf32, #tpu.memory_space<vmem>>, %arg4: memref<2x16x128xf32, #tpu.memory_space<vmem>>) attributes {dimension_semantics = [#tpu.dimension_semantics<arbitrary>], iteration_bounds = array<i64: 1>, scalar_prefetch = 0 : i64, scratch_operands = 0 : i64, tpu.core_type = #tpu.core_type<tc>, window_params = [{pipeline_mode = #tpu.pipeline_mode<synchronous>, transform_indices = @transform_0, window_bounds = array<i64: 2, 16, 64>}, {pipeline_mode = #tpu.pipeline_mode<synchronous>, transform_indices = @transform_1, window_bounds = array<i64: 256, 128>}, {pipeline_mode = #tpu.pipeline_mode<synchronous>, transform_indices = @transform_2, window_bounds = array<i64: 1, 128>}, {pipeline_mode = #tpu.pipeline_mode<synchronous>, transform_indices = @transform_3, window_bounds = array<i64: 2, 16, 128>}]} {
    %c0 = arith.constant 0 : index
    %c0_0 = arith.constant 0 : index
    %c0_1 = arith.constant 0 : index
    %0 = vector.load %arg1[%c0, %c0_0, %c0_1] : memref<2x16x64xf32, #tpu.memory_space<vmem>>, vector<2x16x64xf32>
    %cst = arith.constant 0.000000e+00 : f32
    %1 = vector.broadcast %cst : f32 to vector<2x1x64xf32>
    %2 = vector.extract_strided_slice %0 {offsets = [0, 0, 0], sizes = [2, 15, 64], strides = [1, 1, 1]} : vector<2x16x64xf32> to vector<2x15x64xf32>
    %3 = tpu.concatenate %1, %2 in 1 : vector<2x1x64xf32>, vector<2x15x64xf32> -> vector<2x16x64xf32>
    %4 = vector.extract_strided_slice %0 {offsets = [0, 1, 0], sizes = [2, 15, 64], strides = [1, 1, 1]} : vector<2x16x64xf32> to vector<2x15x64xf32>
    %5 = tpu.concatenate %4, %1 in 1 : vector<2x15x64xf32>, vector<2x1x64xf32> -> vector<2x16x64xf32>
    %cst_2 = arith.constant 0.000000e+00 : f32
    %6 = vector.broadcast %cst_2 : f32 to vector<2x16x64xf32>
    %7 = tpu.concatenate %3, %0, %5, %6 in 2 : vector<2x16x64xf32>, vector<2x16x64xf32>, vector<2x16x64xf32>, vector<2x16x64xf32> -> vector<2x16x256xf32>
    %8 = vector.shape_cast %7 : vector<2x16x256xf32> to vector<32x256xf32>
    %9 = arith.truncf %8 : vector<32x256xf32> to vector<32x256xbf16>
    %c0_3 = arith.constant 0 : index
    %c0_4 = arith.constant 0 : index
    %10 = vector.load %arg2[%c0_3, %c0_4] : memref<256x128xbf16, #tpu.memory_space<vmem>>, vector<256x128xbf16>
    %cst_5 = arith.constant dense<0.000000e+00> : vector<32x128xf32>
    %11 = tpu.matmul %9, %10, %cst_5 {dimension_numbers = #tpu.dot_dimension_numbers<[1], [0], [0], [1], [0, 0, 1, 1], [], []>} : vector<32x256xbf16>, vector<256x128xbf16>, vector<32x128xf32> -> vector<32x128xf32>
    %c0_6 = arith.constant 0 : index
    %c0_7 = arith.constant 0 : index
    %12 = vector.load %arg3[%c0_6, %c0_7] : memref<1x128xf32, #tpu.memory_space<vmem>>, vector<1x128xf32>
    %13 = vector.broadcast %12 : vector<1x128xf32> to vector<32x128xf32>
    %14 = arith.addf %11, %13 : vector<32x128xf32>
    %cst_8 = arith.constant 0.000000e+00 : f32
    %15 = vector.broadcast %cst_8 : f32 to vector<32x128xf32>
    %16 = arith.maximumf %14, %15 : vector<32x128xf32>
    %17 = vector.shape_cast %16 : vector<32x128xf32> to vector<2x16x128xf32>
    %c0_9 = arith.constant 0 : index
    %c0_10 = arith.constant 0 : index
    %c0_11 = arith.constant 0 : index
    %18 = vector.load %arg4[%c0_9, %c0_10, %c0_11] : memref<2x16x128xf32, #tpu.memory_space<vmem>>, vector<2x16x128xf32>
    tpu.vector_store %arg4[%c0_9, %c0_10, %c0_11], %17 {strides = array<i32>} : memref<2x16x128xf32, #tpu.memory_space<vmem>>, vector<2x16x128xf32>,
    return
  }
  func.func @transform_0(%arg0: i32) -> (i32, i32, i32) {
    %c0_i32 = arith.constant 0 : i32
    %c0_i32_0 = arith.constant 0 : i32
    %c0_i32_1 = arith.constant 0 : i32
    %c0_i32_2 = arith.constant 0 : i32
    return %c0_i32, %c0_i32_0, %c0_i32_1 : i32, i32, i32
  }
  func.func @transform_1(%arg0: i32) -> (i32, i32) {
    %c0_i32 = arith.constant 0 : i32
    %c0_i32_0 = arith.constant 0 : i32
    %c0_i32_1 = arith.constant 0 : i32
    return %c0_i32, %c0_i32_0 : i32, i32
  }
  func.func @transform_2(%arg0: i32) -> (i32, i32) {
    %c0_i32 = arith.constant 0 : i32
    %c0_i32_0 = arith.constant 0 : i32
    %c0_i32_1 = arith.constant 0 : i32
    return %c0_i32, %c0_i32_0 : i32, i32
  }
  func.func @transform_3(%arg0: i32) -> (i32, i32, i32) {
    %c0_i32 = arith.constant 0 : i32
    %c0_i32_0 = arith.constant 0 : i32
    %c0_i32_1 = arith.constant 0 : i32
    %c0_i32_2 = arith.constant 0 : i32
    return %c0_i32, %c0_i32_0, %c0_i32_1 : i32, i32, i32
  }
}

</mosaic_0001>

<llo_original>
// kernel: tpu_custom_call.1
$region0: #{tpu_custom_call.1}
  #allocation0 [shape = 'u32[]', space=smem, size = 0x4, offset = 0x4, fixed_abs, tag = 'smem constant byte address 0x4 - core index']
  #allocation1 [shape = 'u32[72,128]{1,0:T(1,128)}', space=vmem, size = 0x9000, scoped, tag = 'internal scratch']
  %s0 = inlined_call_operand.hbm [shape: f32[2,16,64], index: 0, kind: input, shape index: {}]
  %s1 = inlined_call_operand.hbm [shape: bf16[256,128], index: 1, kind: input, shape index: {}]
  %s2 = inlined_call_operand.vmem [shape: f32[1,128], index: 2, kind: input, shape index: {}]
  %s3 = inlined_call_operand.hbm [shape: f32[2,16,128], index: 3, kind: output, shape index: {}]
  %s4 = sld [smem:[#allocation0]]
  $region30: #{tpu_custom_call.1} parent=0
    _
  %s6 = ssub.s32 1, %s4
  %s7 = scalar_select 0, %s6, %s4
  $region1: #{tpu_custom_call.1} parent=0
    #allocation2 [shape = 'u8[16384]{0}', space=vmem, size = 0x4000, scoped, tag = 'input window, operand 0, single buffered']
    #allocation3 [shape = 's32[1]{0}', space=sflag, size = 0x4, scoped, tag = 'scoped memory for tpu_custom_call.1']
    #allocation4 [shape = 's32[1]{0}', space=sflag, size = 0x4, scoped, tag = 'scoped memory for tpu_custom_call.1']
    #allocation5 [shape = 'u8[65536]{0}', space=vmem, size = 0x10000, scoped, tag = 'input window, operand 1, single buffered']
    #allocation6 [shape = 's32[1]{0}', space=sflag, size = 0x4, scoped, tag = 'scoped memory for tpu_custom_call.1']
    #allocation7 [shape = 'u8[16384]{0}', space=vmem, size = 0x4000, scoped, tag = 'output window, operand 0, single buffered']
    %8 = vsyncpa [#allocation3], 0
    %9 = vsyncpa [#allocation6], 0
    %10 = vsyncpa [#allocation4], 0
    // Predicated region
    $region2: #{tpu_custom_call.1} parent=1 // pred_check
      _
    $region3: #{tpu_custom_call.1} parent=1 // pred_check_branch
      %12 = sbr.rel (0) target = $region5
    $region4: #{tpu_custom_call.1} parent=1 // pred_region
      %14 = vsyncadd [#allocation3], 0
      %s15 = sshll.u32 %s0, 4
      %s16 = int_to_ptr.hbm [resolvable:$true] %s15
      %s17 = sshll.u32 [#allocation2], 4
      %s18 = int_to_ptr.vmem [resolvable:$true] %s17
      %23 = dma.hbm_to_vmem [thread:$0]  %s16, 512, %s18, [#allocation3], 128, 128, 8
    $region5: #{tpu_custom_call.1} parent=1 // pred_fallthru
      _
    // Predicated region
    $region6: #{tpu_custom_call.1} parent=1 // pred_check
      _
    $region7: #{tpu_custom_call.1} parent=1 // pred_check_branch
      %25 = sbr.rel (0) target = $region9
    $region8: #{tpu_custom_call.1} parent=1 // pred_region
      %27 = vsyncadd [#allocation6], 0
      %s28 = sshll.u32 %s1, 4
      %s29 = int_to_ptr.hbm [resolvable:$true] %s28
      %s30 = sshll.u32 [#allocation5], 4
      %s31 = int_to_ptr.vmem [resolvable:$true] %s30
      %36 = dma.hbm_to_vmem [thread:$0]  %s29, 2048, %s31, [#allocation6], 64, 64, 4
    $region9: #{tpu_custom_call.1} parent=1 // pred_fallthru
      _
    // Predicated region
    $region10: #{tpu_custom_call.1} parent=1 // pred_check
      _
    $region11: #{tpu_custom_call.1} parent=1 // pred_check_branch
      %38 = sbr.rel (0) target = $region13
    $region12: #{tpu_custom_call.1} parent=1 // pred_region
      _
    $region13: #{tpu_custom_call.1} parent=1 // pred_fallthru
      _
    // Predicated region
    $region14: #{tpu_custom_call.1} parent=1 // pred_check
      _
    $region15: #{tpu_custom_call.1} parent=1 // pred_check_branch
      %40 = sbr.rel (0) target = $region17
    $region16: #{tpu_custom_call.1} parent=1 // pred_region
      %42 = dma.done [#allocation3], 512
    $region17: #{tpu_custom_call.1} parent=1 // pred_fallthru
      _
    // Predicated region
    $region18: #{tpu_custom_call.1} parent=1 // pred_check
      _
    $region19: #{tpu_custom_call.1} parent=1 // pred_check_branch
      %44 = sbr.rel (0) target = $region21
    $region20: #{tpu_custom_call.1} parent=1 // pred_region
      %46 = dma.done [#allocation6], 2048
    $region21: #{tpu_custom_call.1} parent=1 // pred_fallthru
      _
    %v47 = vld [vmem:[#allocation2] sm:$0xff]
    %v48 = vld [vmem:[#allocation2 + $0x8] sm:$0xff]
    %v49 = vld [vmem:[#allocation2 + $0x10] sm:$0xff]
    %v50 = vld [vmem:[#allocation2 + $0x18] sm:$0xff]
    %vm55 = vcmask 1040384
    %v56 = vrot.slane %v47, 7
    %v57 = vrot.slane %v48, 7
    %v58 = vsel %vm55, %v56, %v57
    %v59 = vrot.slane %v49, 7
    %v60 = vrot.slane %v50, 7
    %v61 = vsel %vm55, %v59, %v60
    %v66 = vsel %vm55, 0.0, %v56
    %v67 = vsel %vm55, 0.0, %v59
    %vm68 = vcmask 1046528
    %v69 = vrot.slane %v47, 1
    %v70 = vrot.slane %v48, 1
    %v71 = vsel %vm68, %v69, %v70
    %v72 = vrot.slane %v49, 1
    %v73 = vrot.slane %v50, 1
    %v74 = vsel %vm68, %v72, %v73
    %v79 = vsel %vm68, %v70, 0.0
    %v80 = vsel %vm68, %v73, 0.0
    %81 = vrot.lane.b32.xlu0 %v47, 64
    %v82 = vpop.permute.xlu0 %81
    %83 = vrot.lane.b32.xlu0 %v48, 64
    %v84 = vpop.permute.xlu0 %83
    %85 = vrot.lane.b32.xlu0 %v49, 64
    %v86 = vpop.permute.xlu0 %85
    %87 = vrot.lane.b32.xlu0 %v50, 64
    %v88 = vpop.permute.xlu0 %87
    %vm93 = vcmask 523264
    %v94 = vsel %vm93, %v66, %v82
    %v95 = vsel %vm93, %v58, %v84
    %v96 = vsel %vm93, %v67, %v86
    %v97 = vsel %vm93, %v61, %v88
    %v98 = vsel %vm93, %v71, 0.0
    %v99 = vsel %vm93, %v79, 0.0
    %v100 = vsel %vm93, %v74, 0.0
    %v101 = vsel %vm93, %v80, 0.0
    %v102 = vpack.c.bf16 %v95, %v94
    %v103 = vpack.c.bf16 %v99, %v98
    %v104 = vpack.c.bf16 %v97, %v96
    %v105 = vpack.c.bf16 %v101, %v100
    %v106 = vld [vmem:[#allocation5] sm:$0xf]
    %v107 = vld [vmem:[#allocation5 + $0x4] sm:$0xf]
    %v108 = vld [vmem:[#allocation5 + $0x8] sm:$0xf]
    %v109 = vld [vmem:[#allocation5 + $0xc] sm:$0xf]
    %v110 = vld [vmem:[#allocation5 + $0x10] sm:$0xf]
    %v111 = vld [vmem:[#allocation5 + $0x14] sm:$0xf]
    %v112 = vld [vmem:[#allocation5 + $0x18] sm:$0xf]
    %v113 = vld [vmem:[#allocation5 + $0x1c] sm:$0xf]
    %v114 = vld [vmem:[#allocation5 + $0x20] sm:$0xf]
    %v115 = vld [vmem:[#allocation5 + $0x24] sm:$0xf]
    %v116 = vld [vmem:[#allocation5 + $0x28] sm:$0xf]
    %v117 = vld [vmem:[#allocation5 + $0x2c] sm:$0xf]
    %v118 = vld [vmem:[#allocation5 + $0x30] sm:$0xf]
    %v119 = vld [vmem:[#allocation5 + $0x34] sm:$0xf]
    %v120 = vld [vmem:[#allocation5 + $0x38] sm:$0xf]
    %v121 = vld [vmem:[#allocation5 + $0x3c] sm:$0xf]
    %v122 = vld [vmem:[#allocation5 + $0x40] sm:$0xf]
    %v123 = vld [vmem:[#allocation5 + $0x44] sm:$0xf]
    %v124 = vld [vmem:[#allocation5 + $0x48] sm:$0xf]
    %v125 = vld [vmem:[#allocation5 + $0x4c] sm:$0xf]
    %v126 = vld [vmem:[#allocation5 + $0x50] sm:$0xf]
    %v127 = vld [vmem:[#allocation5 + $0x54] sm:$0xf]
    %v128 = vld [vmem:[#allocation5 + $0x58] sm:$0xf]
    %v129 = vld [vmem:[#allocation5 + $0x5c] sm:$0xf]
    %v130 = vld [vmem:[#allocation5 + $0x60] sm:$0xf]
    %v131 = vld [vmem:[#allocation5 + $0x64] sm:$0xf]
    %v132 = vld [vmem:[#allocation5 + $0x68] sm:$0xf]
    %v133 = vld [vmem:[#allocation5 + $0x6c] sm:$0xf]
    %v134 = vld [vmem:[#allocation5 + $0x70] sm:$0xf]
    %v135 = vld [vmem:[#allocation5 + $0x74] sm:$0xf]
    %v136 = vld [vmem:[#allocation5 + $0x78] sm:$0xf]
    %v137 = vld [vmem:[#allocation5 + $0x7c] sm:$0xf]
    %v138 = vld [vmem:[%s2] sm:$0x1]
    %v140 = vperm.slane %v138, 0
    %v174 = vunpack.c.l.b16 %v106
    %v175 = vunpack.c.l.b16 %v107
    %v176 = vunpack.c.l.b16 %v108
    %v177 = vunpack.c.l.b16 %v109
    %v178 = vunpack.c.l.b16 %v110
    %v179 = vunpack.c.l.b16 %v111
    %v180 = vunpack.c.l.b16 %v112
    %v181 = vunpack.c.l.b16 %v113
    %v182 = vunpack.c.l.b16 %v114
    %v183 = vunpack.c.l.b16 %v115
    %v184 = vunpack.c.l.b16 %v116
    %v185 = vunpack.c.l.b16 %v117
    %v186 = vunpack.c.l.b16 %v118
    %v187 = vunpack.c.l.b16 %v119
    %v188 = vunpack.c.l.b16 %v120
    %v189 = vunpack.c.l.b16 %v121
    %v190 = vunpack.c.l.b16 %v122
    %v191 = vunpack.c.l.b16 %v123
    %v192 = vunpack.c.l.b16 %v124
    %v193 = vunpack.c.l.b16 %v125
    %v194 = vunpack.c.l.b16 %v126
    %v195 = vunpack.c.l.b16 %v127
    %v196 = vunpack.c.l.b16 %v128
    %v197 = vunpack.c.l.b16 %v129
    %v198 = vunpack.c.l.b16 %v130
    %v199 = vunpack.c.l.b16 %v131
    %v200 = vunpack.c.l.b16 %v132
    %v201 = vunpack.c.l.b16 %v133
    %v202 = vunpack.c.l.b16 %v134
    %v203 = vunpack.c.l.b16 %v135
    %v204 = vunpack.c.l.b16 %v136
    %v205 = vunpack.c.l.b16 %v137
    %v206 = vpack.c.b16 %v175, %v174
    %v207 = vpack.c.b16 %v177, %v176
    %v208 = vpack.c.b16 %v179, %v178
    %v209 = vpack.c.b16 %v181, %v180
    %v210 = vpack.c.b16 %v183, %v182
    %v211 = vpack.c.b16 %v185, %v184
    %v212 = vpack.c.b16 %v187, %v186
    %v213 = vpack.c.b16 %v189, %v188
    %v214 = vpack.c.b16 %v191, %v190
    %v215 = vpack.c.b16 %v193, %v192
    %v216 = vpack.c.b16 %v195, %v194
    %v217 = vpack.c.b16 %v197, %v196
    %v218 = vpack.c.b16 %v199, %v198
    %v219 = vpack.c.b16 %v201, %v200
    %v220 = vpack.c.b16 %v203, %v202
    %v221 = vpack.c.b16 %v205, %v204
    %238 = vmatpush.bf16.msra.mxu0 %v213
    %239 = vmatpush.bf16.msra.mxu0 %v212
    %240 = vmatpush.bf16.msra.mxu0 %v211
    %241 = vmatpush.bf16.msra.mxu0 %v210
    %242 = vmatpush.bf16.msra.mxu0 %v209
    %243 = vmatpush.bf16.msra.mxu0 %v208
    %244 = vmatpush.bf16.msra.mxu0 %v207
    %245 = vmatpush.bf16.msra.mxu0 %v206
    %246 = vmatmul.bf16.gmra.mxu0 %v102
    %v247 = vpop.f32.mrf.mxu0
    %v248 = vadd.f32 %v140, %v247
    %v249 = vpop.f32.mrf.mxu0
    %v250 = vadd.f32 %v140, %v249
    %251 = vmatmul.bf16.gmra.mxu0 %v104
    %v252 = vpop.f32.mrf.mxu0
    %v253 = vadd.f32 %v140, %v252
    %v254 = vpop.f32.mrf.mxu0
    %v255 = vadd.f32 %v140, %v254
    %256 = vdwg.mxu0
    %257 = vmatpush.bf16.msra.mxu0 %v221
    %258 = vmatpush.bf16.msra.mxu0 %v220
    %259 = vmatpush.bf16.msra.mxu0 %v219
    %260 = vmatpush.bf16.msra.mxu0 %v218
    %261 = vmatpush.bf16.msra.mxu0 %v217
    %262 = vmatpush.bf16.msra.mxu0 %v216
    %263 = vmatpush.bf16.msra.mxu0 %v215
    %264 = vmatpush.bf16.msra.mxu0 %v214
    %265 = vmatmul.bf16.gmra.mxu0 %v103
    %v266 = vpop.f32.mrf.mxu0
    %v267 = vadd.f32 %v248, %v266
    %v268 = vpop.f32.mrf.mxu0
    %v269 = vadd.f32 %v250, %v268
    %270 = vmatmul.bf16.gmra.mxu0 %v105
    %v271 = vpop.f32.mrf.mxu0
    %v272 = vadd.f32 %v253, %v271
    %v273 = vpop.f32.mrf.mxu0
    %v274 = vadd.f32 %v255, %v273
    %275 = vdwg.mxu0
    %v276 = vmax.f32 %v267, 0.0
    %v277 = vmax.f32 %v269, 0.0
    %v278 = vmax.f32 %v272, 0.0
    %v279 = vmax.f32 %v274, 0.0
    %280 = vst [vmem:[#allocation7] sm:$0xff] %v276
    %281 = vst [vmem:[#allocation7 + $0x8] sm:$0xff] %v277
    %282 = vst [vmem:[#allocation7 + $0x10] sm:$0xff] %v278
    %283 = vst [vmem:[#allocation7 + $0x18] sm:$0xff] %v279
    // Predicated region
    $region22: #{tpu_custom_call.1} parent=1 // pred_check
      _
    $region23: #{tpu_custom_call.1} parent=1 // pred_check_branch
      %285 = sbr.rel (0) target = $region25
    $region24: #{tpu_custom_call.1} parent=1 // pred_region
      %287 = vsyncadd [#allocation4], 0
      %s288 = sshll.u32 [#allocation7], 4
      %s289 = int_to_ptr.vmem [resolvable:$true] %s288
      %s290 = sshll.u32 %s3, 4
      %s291 = int_to_ptr.hbm [resolvable:$true] %s290
      %296 = dma.vmem_to_hbm [thread:$0]  %s289, 512, %s291, [#allocation4], 128, 128, 8
    $region25: #{tpu_custom_call.1} parent=1 // pred_fallthru
      _
    // Predicated region
    $region26: #{tpu_custom_call.1} parent=1 // pred_check
      _
    $region27: #{tpu_custom_call.1} parent=1 // pred_check_branch
      %298 = sbr.rel (0) target = $region29
    $region28: #{tpu_custom_call.1} parent=1 // pred_region
      %300 = dma.done [#allocation4], 512
    $region29: #{tpu_custom_call.1} parent=1 // pred_fallthru
      _
    %301 = vsyncpa [#allocation3], 1
    %302 = vsyncpa [#allocation6], 1
    %303 = vsyncpa [#allocation4], 1

</llo_original>
